<compile_context>
chip_gen: v6e
topology: v6e:2x2x1
jax: 0.10.0
libtpu: 0.0.40
codegen_flags: <defaults>
</compile_context>

<pallas_src>
import numpy as np
import jax
import jax.numpy as jnp
from jax.experimental import pallas as pl
from jax.experimental.pallas import tpu as pltpu


def _ctx_softdot_kernel(h_ref, w_ref, k_ref, mask_ref, ctx_ref, attn_ref):
    # One batch tile of tb rows per grid step.
    h = h_ref[...]                                   # (tb, H) f32
    w = w_ref[...]                                   # (H, V) f32 == linear_in.weight.T
    k = k_ref[...].astype(jnp.float32)               # (tb, N, V) upcast from stream dtype
    mask = mask_ref[...]                             # (tb, N) int32, nonzero == masked

    # target = linear_in(h): one dense MXU matmul for the whole batch tile.
    target = jnp.dot(h, w, preferred_element_type=jnp.float32)       # (tb, V)

    # attn logits = bmm(context, target): VPU broadcast-mul + XLU lane reduce
    # (avoids batched M=1 matmuls on the MXU).
    logits = jnp.sum(k * target[:, None, :], axis=-1)                # (tb, N)

    # masked_fill_(mask, -inf)
    logits = jnp.where(mask != 0, -jnp.inf, logits)

    # softmax over seq_len. Reciprocal on the EUP; one Newton step restores
    # full f32 accuracy while keeping the VALU free.
    m = jnp.max(logits, axis=-1, keepdims=True)
    e = jnp.exp(logits - m)
    s = jnp.sum(e, axis=-1, keepdims=True)
    inv = pl.reciprocal(s, approx=True)
    inv = inv * (2.0 - s * inv)
    attn = e * inv                                                   # (tb, N)

    # weighted_context = bmm(attn, context): VPU mul + XLU sublane reduce.
    ctx = jnp.sum(attn[:, :, None] * k, axis=1)                      # (tb, V)

    ctx_ref[...] = ctx.astype(ctx_ref.dtype)
    attn_ref[...] = attn.astype(attn_ref.dtype)                      # direct (tb, N) store


def _vmem_capacity_bytes():
    try:
        info = pltpu.get_tpu_info()
        cap = int(getattr(info, "vmem_capacity_bytes", 0))
        if cap > 0:
            return cap
    except Exception:
        pass
    return 64 * 1024 * 1024   # conservative default (v7x per-TensorCore VMEM)


def _pick_batch_tile(B, per_row_bytes, vmem_budget, block_b):
    """Largest batch tile that fits the VMEM budget, keeping >= 2 grid steps
    when the batch is large enough to split (megacore + pipelining)."""
    tb = max(1, vmem_budget // max(per_row_bytes, 1))
    if block_b is not None:
        tb = min(tb, block_b)
    if tb >= B and B >= 16:
        tb = -(-B // 2)            # aim for >= 2 grid steps
    if tb >= B or B < 8:
        return B                   # single tile: block dims equal full dims
    return max(8, (tb // 8) * 8)   # multi-step: keep the sublane dim 8-aligned


def context_only_soft_dot_attention(h, context, weight, mask=None, *,
                                    block_b=None,
                                    context_stream_dtype=jnp.bfloat16):
    """ContextOnlySoftDotAttention.forward.

    h:       (B, dim)              float
    context: (B, seq_len, ctx_dim) float
    weight:  (ctx_dim, dim)        linear_in.weight (PyTorch layout, bias=False)
    mask:    optional (B, seq_len) nonzero/True == masked
    Returns (weighted_context (B, ctx_dim), attn (B, seq_len)), attn post-softmax.

    The context tensor is streamed from HBM in `context_stream_dtype`
    (default bfloat16, halving the dominant HBM traffic); arithmetic inside
    the kernel is float32. Pass context_stream_dtype=jnp.float32 for a
    bitwise match with the f32 PyTorch reference.
    """
    B, H = h.shape
    _, N, V = context.shape
    assert weight.shape == (V, H)

    h32 = h.astype(jnp.float32)
    w_t = weight.T.astype(jnp.float32)                               # (H, V)
    ctx_stream = context.astype(context_stream_dtype)
    mask_i = (jnp.zeros((B, N), jnp.int32) if mask is None
              else mask.astype(jnp.int32))

    stream_bytes = jnp.dtype(context_stream_dtype).itemsize

    # Per-chip VMEM budget. Per batch row we hold: the double-buffered
    # streamed context tile (2 * stream_bytes/elem), plus f32 upcast and one
    # live f32 product intermediate (8 bytes/elem), plus the small per-row
    # vectors (h, target/ctx, mask, attn), double-buffered.
    vmem_cap = _vmem_capacity_bytes()
    budget = int(vmem_cap * 0.45) - 2 * H * V * 4                    # W^T buffers off the top
    per_row = N * V * (2 * stream_bytes + 8) + (H + V + 2 * N) * 8
    tb = _pick_batch_tile(B, per_row, max(budget, per_row), block_b)
    grid_steps = -(-B // tb)      # ragged tail handled by Pallas, no jnp.pad

    cost = pl.CostEstimate(
        flops=2 * B * (H * V + 2 * N * V),
        transcendentals=B * (N + 1),
        bytes_accessed=(B * N * V * stream_bytes
                        + 4 * (B * (H + V + 2 * N) + H * V)),
    )

    def build(single_buffer_w):
        if single_buffer_w:
            # Constant index map keeps W^T resident; single-buffer it to halve
            # its VMEM footprint (matters most under v7x's 64 MiB).
            w_spec = pl.BlockSpec((H, V), lambda i: (0, 0),
                                  pipeline_mode=pl.Buffered(1))
        else:
            w_spec = pl.BlockSpec((H, V), lambda i: (0, 0))
        grid_spec = pltpu.PrefetchScalarGridSpec(
            num_scalar_prefetch=0,
            grid=(grid_steps,),
            in_specs=[
                pl.BlockSpec((tb, H), lambda i: (i, 0)),          # h tile
                w_spec,                                           # W^T (resident)
                pl.BlockSpec((tb, N, V), lambda i: (i, 0, 0)),    # context tile (dominant)
                pl.BlockSpec((tb, N), lambda i: (i, 0)),          # mask tile
            ],
            out_specs=[
                pl.BlockSpec((tb, V), lambda i: (i, 0)),          # weighted context
                pl.BlockSpec((tb, N), lambda i: (i, 0)),          # attn (direct layout)
            ],
        )
        return pl.pallas_call(
            _ctx_softdot_kernel,
            out_shape=(
                jax.ShapeDtypeStruct((B, V), jnp.float32),
                jax.ShapeDtypeStruct((B, N), jnp.float32),
            ),
            grid_spec=grid_spec,
            compiler_params=pltpu.CompilerParams(
                dimension_semantics=("parallel",),
                vmem_limit_bytes=int(vmem_cap * 0.75),
            ),
            cost_estimate=cost,
        )

    try:
        ctx_out, attn_out = build(True)(h32, w_t, ctx_stream, mask_i)
    except Exception:
        # Fallback for JAX builds that reject pipeline_mode on pallas_call specs.
        ctx_out, attn_out = build(False)(h32, w_t, ctx_stream, mask_i)

    return ctx_out, attn_out


def _reference(h, context, weight, mask=None):
    hp = jax.lax.Precision.HIGHEST
    target = jnp.dot(h, weight.T, precision=hp)                       # (B, V)
    logits = jnp.einsum("bnv,bv->bn", context, target, precision=hp)  # (B, N)
    if mask is not None:
        logits = jnp.where(mask != 0, -jnp.inf, logits)
    attn = jax.nn.softmax(logits, axis=1)
    ctx = jnp.einsum("bn,bnv->bv", attn, context, precision=hp)
    return ctx, attn


if __name__ == "__main__":
    # --- Test 1: module-scale shapes with a mask (single-tile path) ---------
    B, DIM, CTX_DIM, SEQ = 2, 32, 64, 8   # batch, dim, context_dim, seq_len
    k_h, k_c, k_w = jax.random.split(jax.random.PRNGKey(0), 3)

    h = jax.random.normal(k_h, (B, DIM), dtype=jnp.float32)
    context = jax.random.normal(k_c, (B, SEQ, CTX_DIM), dtype=jnp.float32)
    # nn.Linear(dim, context_dim, bias=False): weight shape (context_dim, dim)
    weight = jax.random.normal(k_w, (CTX_DIM, DIM), dtype=jnp.float32) / np.sqrt(DIM)
    # Mask the last two slots of batch element 1 (at least one unmasked per row).
    mask = jnp.zeros((B, SEQ), dtype=jnp.int32).at[1, -2:].set(1)

    ctx_out, attn = context_only_soft_dot_attention(h, context, weight, mask)
    jax.block_until_ready((ctx_out, attn))

    # Tight check against a reference fed the same bf16-rounded context.
    context_rt = context.astype(jnp.bfloat16).astype(jnp.float32)
    ctx_ref, attn_ref = _reference(h, context_rt, weight, mask)
    np.testing.assert_allclose(np.asarray(ctx_out), np.asarray(ctx_ref), atol=1e-4, rtol=1e-4)
    np.testing.assert_allclose(np.asarray(attn), np.asarray(attn_ref), atol=1e-5, rtol=1e-4)
    # Loose sanity check against the pure-f32 PyTorch-equivalent reference
    # (context is streamed bf16, so only approximate agreement is expected).
    ctx_ref32, attn_ref32 = _reference(h, context, weight, mask)
    np.testing.assert_allclose(np.asarray(ctx_out), np.asarray(ctx_ref32), atol=5e-2, rtol=5e-2)
    np.testing.assert_allclose(np.asarray(attn), np.asarray(attn_ref32), atol=2e-2, rtol=2e-2)
    # Masked positions must be exactly zero after softmax; rows sum to one.
    assert np.all(np.asarray(attn)[np.asarray(mask) != 0] == 0.0)
    np.testing.assert_allclose(np.asarray(attn).sum(axis=1), np.ones(B), atol=1e-5, rtol=1e-5)

    # --- Test 2: multi-step ragged grid (no padding), lane-dense attn, no mask
    B2, DIM2, CTX2, SEQ2 = 20, 32, 128, 128
    k_h2, k_c2, k_w2 = jax.random.split(jax.random.PRNGKey(1), 3)
    h2 = jax.random.normal(k_h2, (B2, DIM2), dtype=jnp.float32)
    context2 = jax.random.normal(k_c2, (B2, SEQ2, CTX2), dtype=jnp.float32)
    weight2 = jax.random.normal(k_w2, (CTX2, DIM2), dtype=jnp.float32) / np.sqrt(DIM2)

    ctx2, attn2 = context_only_soft_dot_attention(h2, context2, weight2, None, block_b=8)
    jax.block_until_ready((ctx2, attn2))
    ctx2_ref, attn2_ref = _reference(
        h2, context2.astype(jnp.bfloat16).astype(jnp.float32), weight2, None)
    np.testing.assert_allclose(np.asarray(ctx2), np.asarray(ctx2_ref), atol=1e-3, rtol=1e-3)
    np.testing.assert_allclose(np.asarray(attn2), np.asarray(attn2_ref), atol=5e-5, rtol=5e-4)
    np.testing.assert_allclose(np.asarray(attn2).sum(axis=1), np.ones(B2), atol=1e-5, rtol=1e-5)

    print("KERNEL_OK")
</pallas_src>

<mosaic_0001>
module attributes {stable_mosaic.version = 11 : i64} {
  func.func @_ctx_softdot_kernel(%arg0: i32, %arg1: memref<2x32xf32, #tpu.memory_space<vmem>>, %arg2: memref<32x64xf32, #tpu.memory_space<vmem>>, %arg3: memref<2x8x64xbf16, #tpu.memory_space<vmem>>, %arg4: memref<2x8xi32, #tpu.memory_space<vmem>>, %arg5: memref<2x64xf32, #tpu.memory_space<vmem>>, %arg6: memref<2x8xf32, #tpu.memory_space<vmem>>) attributes {dimension_semantics = [#tpu.dimension_semantics<parallel>], iteration_bounds = array<i64: 1>, scalar_prefetch = 0 : i64, scratch_operands = 0 : i64, tpu.core_type = #tpu.core_type<tc>, window_params = [{transform_indices = @transform_0, window_bounds = array<i64: 2, 32>}, {pipeline_mode = #tpu.pipeline_mode<synchronous>, transform_indices = @transform_1, window_bounds = array<i64: 32, 64>}, {transform_indices = @transform_2, window_bounds = array<i64: 2, 8, 64>}, {transform_indices = @transform_3, window_bounds = array<i64: 2, 8>}, {transform_indices = @transform_4, window_bounds = array<i64: 2, 64>}, {transform_indices = @transform_5, window_bounds = array<i64: 2, 8>}]} {
    %c0 = arith.constant 0 : index
    %c0_0 = arith.constant 0 : index
    %0 = vector.load %arg1[%c0, %c0_0] : memref<2x32xf32, #tpu.memory_space<vmem>>, vector<2x32xf32>
    %c0_1 = arith.constant 0 : index
    %c0_2 = arith.constant 0 : index
    %1 = vector.load %arg2[%c0_1, %c0_2] : memref<32x64xf32, #tpu.memory_space<vmem>>, vector<32x64xf32>
    %c0_3 = arith.constant 0 : index
    %c0_4 = arith.constant 0 : index
    %c0_5 = arith.constant 0 : index
    %2 = vector.load %arg3[%c0_3, %c0_4, %c0_5] : memref<2x8x64xbf16, #tpu.memory_space<vmem>>, vector<2x8x64xbf16>
    %3 = arith.extf %2 : vector<2x8x64xbf16> to vector<2x8x64xf32>
    %c0_6 = arith.constant 0 : index
    %c0_7 = arith.constant 0 : index
    %4 = vector.load %arg4[%c0_6, %c0_7] : memref<2x8xi32, #tpu.memory_space<vmem>>, vector<2x8xi32>
    %cst = arith.constant dense<0.000000e+00> : vector<2x64xf32>
    %5 = tpu.matmul %0, %1, %cst {dimension_numbers = #tpu.dot_dimension_numbers<[1], [0], [0], [1], [0, 0, 1, 1], [], []>} : vector<2x32xf32>, vector<32x64xf32>, vector<2x64xf32> -> vector<2x64xf32>
    %6 = vector.shape_cast %5 : vector<2x64xf32> to vector<2x1x64xf32>
    %7 = vector.broadcast %6 : vector<2x1x64xf32> to vector<2x8x64xf32>
    %8 = arith.mulf %3, %7 : vector<2x8x64xf32>
    %cst_8 = arith.constant dense<0.000000e+00> : vector<2x8xf32>
    %9 = vector.multi_reduction <add>, %8, %cst_8 [2] : vector<2x8x64xf32> to vector<2x8xf32>
    %c0_i32 = arith.constant 0 : i32
    %10 = vector.broadcast %c0_i32 : i32 to vector<2x8xi32>
    %11 = arith.cmpi ne, %4, %10 : vector<2x8xi32>
    %cst_9 = arith.constant 0xFF800000 : f32
    %12 = vector.broadcast %cst_9 : f32 to vector<2x8xf32>
    %13 = arith.select %11, %12, %9 : vector<2x8xi1>, vector<2x8xf32>
    %cst_10 = arith.constant dense<0xFF800000> : vector<2xf32>
    %14 = vector.multi_reduction <maximumf>, %13, %cst_10 [1] : vector<2x8xf32> to vector<2xf32>
    %15 = vector.shape_cast %14 : vector<2xf32> to vector<2x1xf32>
    %16 = vector.broadcast %15 : vector<2x1xf32> to vector<2x8xf32>
    %17 = arith.subf %13, %16 : vector<2x8xf32>
    %18 = math.exp %17 : vector<2x8xf32>
    %cst_11 = arith.constant dense<0.000000e+00> : vector<2xf32>
    %19 = vector.multi_reduction <add>, %18, %cst_11 [1] : vector<2x8xf32> to vector<2xf32>
    %20 = vector.shape_cast %19 : vector<2xf32> to vector<2x1xf32>
    %21 = tpu.reciprocal %20 {approx = true} : vector<2x1xf32> -> vector<2x1xf32>
    %22 = arith.mulf %20, %21 : vector<2x1xf32>
    %cst_12 = arith.constant 2.000000e+00 : f32
    %23 = vector.broadcast %cst_12 : f32 to vector<2x1xf32>
    %24 = arith.subf %23, %22 : vector<2x1xf32>
    %25 = arith.mulf %21, %24 : vector<2x1xf32>
    %26 = vector.broadcast %25 : vector<2x1xf32> to vector<2x8xf32>
    %27 = arith.mulf %18, %26 : vector<2x8xf32>
    %28 = vector.shape_cast %27 : vector<2x8xf32> to vector<2x8x1xf32>
    %29 = vector.broadcast %28 : vector<2x8x1xf32> to vector<2x8x64xf32>
    %30 = arith.mulf %29, %3 : vector<2x8x64xf32>
    %cst_13 = arith.constant dense<0.000000e+00> : vector<2x64xf32>
    %31 = vector.multi_reduction <add>, %30, %cst_13 [1] : vector<2x8x64xf32> to vector<2x64xf32>
    %c0_14 = arith.constant 0 : index
    %c0_15 = arith.constant 0 : index
    %32 = vector.load %arg5[%c0_14, %c0_15] : memref<2x64xf32, #tpu.memory_space<vmem>>, vector<2x64xf32>
    tpu.vector_store %arg5[%c0_14, %c0_15], %31 {strides = array<i32>} : memref<2x64xf32, #tpu.memory_space<vmem>>, vector<2x64xf32>,
    %c0_16 = arith.constant 0 : index
    %c0_17 = arith.constant 0 : index
    %33 = vector.load %arg6[%c0_16, %c0_17] : memref<2x8xf32, #tpu.memory_space<vmem>>, vector<2x8xf32>
    tpu.vector_store %arg6[%c0_16, %c0_17], %27 {strides = array<i32>} : memref<2x8xf32, #tpu.memory_space<vmem>>, vector<2x8xf32>,
    return
  }
  func.func @transform_0(%arg0: i32) -> (i32, i32) {
    %c0_i32 = arith.constant 0 : i32
    %c0_i32_0 = arith.constant 0 : i32
    return %arg0, %c0_i32 : i32, i32
  }
  func.func @transform_1(%arg0: i32) -> (i32, i32) {
    %c0_i32 = arith.constant 0 : i32
    %c0_i32_0 = arith.constant 0 : i32
    %c0_i32_1 = arith.constant 0 : i32
    return %c0_i32, %c0_i32_0 : i32, i32
  }
  func.func @transform_2(%arg0: i32) -> (i32, i32, i32) {
    %c0_i32 = arith.constant 0 : i32
    %c0_i32_0 = arith.constant 0 : i32
    %c0_i32_1 = arith.constant 0 : i32
    return %arg0, %c0_i32, %c0_i32_0 : i32, i32, i32
  }
  func.func @transform_3(%arg0: i32) -> (i32, i32) {
    %c0_i32 = arith.constant 0 : i32
    %c0_i32_0 = arith.constant 0 : i32
    return %arg0, %c0_i32 : i32, i32
  }
  func.func @transform_4(%arg0: i32) -> (i32, i32) {
    %c0_i32 = arith.constant 0 : i32
    %c0_i32_0 = arith.constant 0 : i32
    return %arg0, %c0_i32 : i32, i32
  }
  func.func @transform_5(%arg0: i32) -> (i32, i32) {
    %c0_i32 = arith.constant 0 : i32
    %c0_i32_0 = arith.constant 0 : i32
    return %arg0, %c0_i32 : i32, i32
  }
}

module attributes {stable_mosaic.version = 11 : i64} {
  func.func @_ctx_softdot_kernel(%arg0: i32, %arg1: memref<2x32xf32, #tpu.memory_space<vmem>>, %arg2: memref<32x64xf32, #tpu.memory_space<vmem>>, %arg3: memref<2x8x64xbf16, #tpu.memory_space<vmem>>, %arg4: memref<2x8xi32, #tpu.memory_space<vmem>>, %arg5: memref<2x64xf32, #tpu.memory_space<vmem>>, %arg6: memref<2x8xf32, #tpu.memory_space<vmem>>) attributes {dimension_semantics = [#tpu.dimension_semantics<parallel>], iteration_bounds = array<i64: 1>, scalar_prefetch = 0 : i64, scratch_operands = 0 : i64, tpu.core_type = #tpu.core_type<tc>, window_params = [{transform_indices = @transform_0, window_bounds = array<i64: 2, 32>}, {pipeline_mode = #tpu.pipeline_mode<synchronous>, transform_indices = @transform_1, window_bounds = array<i64: 32, 64>}, {transform_indices = @transform_2, window_bounds = array<i64: 2, 8, 64>}, {transform_indices = @transform_3, window_bounds = array<i64: 2, 8>}, {transform_indices = @transform_4, window_bounds = array<i64: 2, 64>}, {transform_indices = @transform_5, window_bounds = array<i64: 2, 8>}]} {
    %c0 = arith.constant 0 : index
    %c0_0 = arith.constant 0 : index
    %0 = vector.load %arg1[%c0, %c0_0] : memref<2x32xf32, #tpu.memory_space<vmem>>, vector<2x32xf32>
    %c0_1 = arith.constant 0 : index
    %c0_2 = arith.constant 0 : index
    %1 = vector.load %arg2[%c0_1, %c0_2] : memref<32x64xf32, #tpu.memory_space<vmem>>, vector<32x64xf32>
    %c0_3 = arith.constant 0 : index
    %c0_4 = arith.constant 0 : index
    %c0_5 = arith.constant 0 : index
    %2 = vector.load %arg3[%c0_3, %c0_4, %c0_5] : memref<2x8x64xbf16, #tpu.memory_space<vmem>>, vector<2x8x64xbf16>
    %3 = arith.extf %2 : vector<2x8x64xbf16> to vector<2x8x64xf32>
    %c0_6 = arith.constant 0 : index
    %c0_7 = arith.constant 0 : index
    %4 = vector.load %arg4[%c0_6, %c0_7] : memref<2x8xi32, #tpu.memory_space<vmem>>, vector<2x8xi32>
    %cst = arith.constant dense<0.000000e+00> : vector<2x64xf32>
    %5 = tpu.matmul %0, %1, %cst {dimension_numbers = #tpu.dot_dimension_numbers<[1], [0], [0], [1], [0, 0, 1, 1], [], []>} : vector<2x32xf32>, vector<32x64xf32>, vector<2x64xf32> -> vector<2x64xf32>
    %6 = vector.shape_cast %5 : vector<2x64xf32> to vector<2x1x64xf32>
    %7 = vector.broadcast %6 : vector<2x1x64xf32> to vector<2x8x64xf32>
    %8 = arith.mulf %3, %7 : vector<2x8x64xf32>
    %cst_8 = arith.constant dense<0.000000e+00> : vector<2x8xf32>
    %9 = vector.multi_reduction <add>, %8, %cst_8 [2] : vector<2x8x64xf32> to vector<2x8xf32>
    %c0_i32 = arith.constant 0 : i32
    %10 = vector.broadcast %c0_i32 : i32 to vector<2x8xi32>
    %11 = arith.cmpi ne, %4, %10 : vector<2x8xi32>
    %cst_9 = arith.constant 0xFF800000 : f32
    %12 = vector.broadcast %cst_9 : f32 to vector<2x8xf32>
    %13 = arith.select %11, %12, %9 : vector<2x8xi1>, vector<2x8xf32>
    %cst_10 = arith.constant dense<0xFF800000> : vector<2xf32>
    %14 = vector.multi_reduction <maximumf>, %13, %cst_10 [1] : vector<2x8xf32> to vector<2xf32>
    %15 = vector.shape_cast %14 : vector<2xf32> to vector<2x1xf32>
    %16 = vector.broadcast %15 : vector<2x1xf32> to vector<2x8xf32>
    %17 = arith.subf %13, %16 : vector<2x8xf32>
    %18 = math.exp %17 : vector<2x8xf32>
    %cst_11 = arith.constant dense<0.000000e+00> : vector<2xf32>
    %19 = vector.multi_reduction <add>, %18, %cst_11 [1] : vector<2x8xf32> to vector<2xf32>
    %20 = vector.shape_cast %19 : vector<2xf32> to vector<2x1xf32>
    %21 = tpu.reciprocal %20 {approx = true} : vector<2x1xf32> -> vector<2x1xf32>
    %22 = arith.mulf %20, %21 : vector<2x1xf32>
    %cst_12 = arith.constant 2.000000e+00 : f32
    %23 = vector.broadcast %cst_12 : f32 to vector<2x1xf32>
    %24 = arith.subf %23, %22 : vector<2x1xf32>
    %25 = arith.mulf %21, %24 : vector<2x1xf32>
    %26 = vector.broadcast %25 : vector<2x1xf32> to vector<2x8xf32>
    %27 = arith.mulf %18, %26 : vector<2x8xf32>
    %28 = vector.shape_cast %27 : vector<2x8xf32> to vector<2x8x1xf32>
    %29 = vector.broadcast %28 : vector<2x8x1xf32> to vector<2x8x64xf32>
    %30 = arith.mulf %29, %3 : vector<2x8x64xf32>
    %cst_13 = arith.constant dense<0.000000e+00> : vector<2x64xf32>
    %31 = vector.multi_reduction <add>, %30, %cst_13 [1] : vector<2x8x64xf32> to vector<2x64xf32>
    %c0_14 = arith.constant 0 : index
    %c0_15 = arith.constant 0 : index
    %32 = vector.load %arg5[%c0_14, %c0_15] : memref<2x64xf32, #tpu.memory_space<vmem>>, vector<2x64xf32>
    tpu.vector_store %arg5[%c0_14, %c0_15], %31 {strides = array<i32>} : memref<2x64xf32, #tpu.memory_space<vmem>>, vector<2x64xf32>,
    %c0_16 = arith.constant 0 : index
    %c0_17 = arith.constant 0 : index
    %33 = vector.load %arg6[%c0_16, %c0_17] : memref<2x8xf32, #tpu.memory_space<vmem>>, vector<2x8xf32>
    tpu.vector_store %arg6[%c0_16, %c0_17], %27 {strides = array<i32>} : memref<2x8xf32, #tpu.memory_space<vmem>>, vector<2x8xf32>,
    return
  }
  func.func @transform_0(%arg0: i32) -> (i32, i32) {
    %c0_i32 = arith.constant 0 : i32
    %c0_i32_0 = arith.constant 0 : i32
    return %arg0, %c0_i32 : i32, i32
  }
  func.func @transform_1(%arg0: i32) -> (i32, i32) {
    %c0_i32 = arith.constant 0 : i32
    %c0_i32_0 = arith.constant 0 : i32
    %c0_i32_1 = arith.constant 0 : i32
    return %c0_i32, %c0_i32_0 : i32, i32
  }
  func.func @transform_2(%arg0: i32) -> (i32, i32, i32) {
    %c0_i32 = arith.constant 0 : i32
    %c0_i32_0 = arith.constant 0 : i32
    %c0_i32_1 = arith.constant 0 : i32
    return %arg0, %c0_i32, %c0_i32_0 : i32, i32, i32
  }
  func.func @transform_3(%arg0: i32) -> (i32, i32) {
    %c0_i32 = arith.constant 0 : i32
    %c0_i32_0 = arith.constant 0 : i32
    return %arg0, %c0_i32 : i32, i32
  }
  func.func @transform_4(%arg0: i32) -> (i32, i32) {
    %c0_i32 = arith.constant 0 : i32
    %c0_i32_0 = arith.constant 0 : i32
    return %arg0, %c0_i32 : i32, i32
  }
  func.func @transform_5(%arg0: i32) -> (i32, i32) {
    %c0_i32 = arith.constant 0 : i32
    %c0_i32_0 = arith.constant 0 : i32
    return %arg0, %c0_i32 : i32, i32
  }
}

</mosaic_0001>

<llo_original>
// kernel: tpu_custom_call.1
$region0: #{tpu_custom_call.1}
  #allocation0 [shape = 'u32[]', space=smem, size = 0x4, offset = 0x4, fixed_abs, tag = 'smem constant byte address 0x4 - core index']
  #allocation1 [shape = 'u32[144,128]{1,0:T(1,128)}', space=vmem, size = 0x12000, scoped, tag = 'internal scratch']
  %s0 = inlined_call_operand.hbm [shape: f32[2,32], index: 0, kind: input, shape index: {}]
  %s1 = inlined_call_operand.hbm [shape: f32[32,64], index: 1, kind: input, shape index: {}]
  %s2 = inlined_call_operand.hbm [shape: bf16[2,8,64], index: 2, kind: input, shape index: {}]
  %s3 = inlined_call_operand.vmem [shape: s32[2,8], index: 3, kind: input, shape index: {}]
  %s4 = inlined_call_operand.hbm [shape: f32[2,64], index: 4, kind: output, shape index: {0}]
  %s5 = inlined_call_operand.hbm [shape: f32[2,8], index: 5, kind: output, shape index: {1}]
  %6 = xla_tuple %s4, %s5
  %s7 = sld [smem:[#allocation0]]
  $region46: #{tpu_custom_call.1} parent=0
    _
  %s9 = ssub.s32 1, %s7
  %s10 = scalar_select 0, %s9, %s7
  $region1: #{tpu_custom_call.1} parent=0
    #allocation2 [shape = 'u8[1024]{0}', space=vmem, size = 0x400, scoped, tag = 'input window, operand 0, single buffered']
    #allocation3 [shape = 's32[1]{0}', space=sflag, size = 0x4, scoped, tag = 'scoped memory for tpu_custom_call.1']
    #allocation4 [shape = 's32[1]{0}', space=sflag, size = 0x4, scoped, tag = 'scoped memory for tpu_custom_call.1']
    #allocation5 [shape = 'u8[16384]{0}', space=vmem, size = 0x4000, scoped, tag = 'input window, operand 1, single buffered']
    #allocation6 [shape = 's32[1]{0}', space=sflag, size = 0x4, scoped, tag = 'scoped memory for tpu_custom_call.1']
    #allocation7 [shape = 'u8[4096]{0}', space=vmem, size = 0x1000, scoped, tag = 'input window, operand 2, single buffered']
    #allocation8 [shape = 'u8[1024]{0}', space=vmem, size = 0x400, scoped, tag = 'output window, operand 0, single buffered']
    #allocation9 [shape = 'u8[1024]{0}', space=vmem, size = 0x400, scoped, tag = 'output window, operand 1, single buffered']
    #allocation10 [shape = 's32[1]{0}', space=sflag, size = 0x4, scoped, tag = 'scoped memory for tpu_custom_call.1']
    %11 = vsyncpa [#allocation3], 0
    %12 = vsyncpa [#allocation6], 0
    %13 = vsyncpa [#allocation4], 0
    %14 = vsyncpa [#allocation10], 0
    // Predicated region
    $region2: #{tpu_custom_call.1} parent=1 // pred_check
      _
    $region3: #{tpu_custom_call.1} parent=1 // pred_check_branch
      %16 = sbr.rel (0) target = $region5
    $region4: #{tpu_custom_call.1} parent=1 // pred_region
      %s18 = ssub.s32 32, 32
      %19 = vsyncadd [#allocation3], %s18
      %s21 = sshll.u32 [#allocation2], 4
      %s22 = int_to_ptr.vmem [resolvable:$true] %s21
      %24 = dma.hbm_to_vmem [thread:$0]  %s0, 32, %s22, [#allocation3]
    $region5: #{tpu_custom_call.1} parent=1 // pred_fallthru
      _
    // Predicated region
    $region6: #{tpu_custom_call.1} parent=1 // pred_check
      _
    $region7: #{tpu_custom_call.1} parent=1 // pred_check_branch
      %26 = sbr.rel (0) target = $region9
    $region8: #{tpu_custom_call.1} parent=1 // pred_region
      %s28 = ssub.s32 512, 512
      %29 = vsyncadd [#allocation6], %s28
      %s30 = sshll.u32 [#allocation5], 4
      %s31 = int_to_ptr.vmem [resolvable:$true] %s30
      %36 = dma.hbm_to_vmem [thread:$0]  %s1, 512, %s31, [#allocation6], 128, 128, 8
    $region9: #{tpu_custom_call.1} parent=1 // pred_fallthru
      _
    // Predicated region
    $region10: #{tpu_custom_call.1} parent=1 // pred_check
      _
    $region11: #{tpu_custom_call.1} parent=1 // pred_check_branch
      %38 = sbr.rel (0) target = $region13
    $region12: #{tpu_custom_call.1} parent=1 // pred_region
      %s40 = ssub.s32 128, 128
      %41 = vsyncadd [#allocation6], %s40
      %s42 = sshll.u32 [#allocation7], 4
      %s43 = int_to_ptr.vmem [resolvable:$true] %s42
      %48 = dma.hbm_to_vmem [thread:$0]  %s2, 128, %s43, [#allocation6], 64, 64, 4
    $region13: #{tpu_custom_call.1} parent=1 // pred_fallthru
      _
    // Predicated region
    $region14: #{tpu_custom_call.1} parent=1 // pred_check
      _
    $region15: #{tpu_custom_call.1} parent=1 // pred_check_branch
      %50 = sbr.rel (0) target = $region17
    $region16: #{tpu_custom_call.1} parent=1 // pred_region
      _
    $region17: #{tpu_custom_call.1} parent=1 // pred_fallthru
      _
    // Predicated region
    $region18: #{tpu_custom_call.1} parent=1 // pred_check
      _
    $region19: #{tpu_custom_call.1} parent=1 // pred_check_branch
      %52 = sbr.rel (0) target = $region21
    $region20: #{tpu_custom_call.1} parent=1 // pred_region
      %53 = dma.done [#allocation3], 32
    $region21: #{tpu_custom_call.1} parent=1 // pred_fallthru
      _
    // Predicated region
    $region22: #{tpu_custom_call.1} parent=1 // pred_check
      _
    $region23: #{tpu_custom_call.1} parent=1 // pred_check_branch
      %55 = sbr.rel (0) target = $region25
    $region24: #{tpu_custom_call.1} parent=1 // pred_region
      %56 = dma.done [#allocation6], 512
    $region25: #{tpu_custom_call.1} parent=1 // pred_fallthru
      _
    // Predicated region
    $region26: #{tpu_custom_call.1} parent=1 // pred_check
      _
    $region27: #{tpu_custom_call.1} parent=1 // pred_check_branch
      %58 = sbr.rel (0) target = $region29
    $region28: #{tpu_custom_call.1} parent=1 // pred_region
      %59 = dma.done [#allocation6], 128
    $region29: #{tpu_custom_call.1} parent=1 // pred_fallthru
      _
    %v60 = vld [vmem:[#allocation2] sm:$0x3]
    %v61 = vld [vmem:[#allocation5] sm:$0xff]
    %v62 = vld [vmem:[#allocation5 + $0x8] sm:$0xff]
    %v63 = vld [vmem:[#allocation5 + $0x10] sm:$0xff]
    %v64 = vld [vmem:[#allocation5 + $0x18] sm:$0xff]
    %v65 = vld [vmem:[#allocation7] sm:$0xf]
    %v66 = vld [vmem:[#allocation7 + $0x4] sm:$0xf]
    %v67 = vunpack.c.l.bf16 %v65
    %v68 = vunpack.c.l.bf16 %v66
    %v69 = vld [vmem:[%s3] sm:$0x3]
    %vm70 = vcmask 261120
    %v72 = vsel %vm70, %v60, 0
    %74 = vmatprep.subr.mxu0 0.0
    %75 = vmatpush1.msra.mxu0 0.0
    %76 = vmatprep.subr.mxu0 0.0
    %77 = vmatpush1.msra.mxu0 0.0
    %78 = vmatprep.subr.mxu0 0.0
    %79 = vmatpush1.msra.mxu0 0.0
    %80 = vmatprep.subr.mxu0 0.0
    %81 = vmatpush1.msra.mxu0 0.0
    %82 = vmatprep.subr.mxu0 0.0
    %83 = vmatpush1.msra.mxu0 0.0
    %84 = vmatprep.subr.mxu0 0.0
    %85 = vmatpush1.msra.mxu0 0.0
    %86 = vmatprep.subr.mxu0 0.0
    %87 = vmatpush1.msra.mxu0 0.0
    %88 = vmatprep.subr.mxu0 0.0
    %89 = vmatpush1.msra.mxu0 0.0
    %90 = vmatprep.subr.mxu0 0.0
    %91 = vmatpush1.msra.mxu0 0.0
    %92 = vmatprep.subr.mxu0 0.0
    %93 = vmatpush1.msra.mxu0 0.0
    %94 = vmatprep.subr.mxu0 0.0
    %95 = vmatpush1.msra.mxu0 0.0
    %96 = vmatprep.subr.mxu0 0.0
    %97 = vmatpush1.msra.mxu0 0.0
    %98 = vmatprep.subr.mxu0 0.0
    %99 = vmatpush1.msra.mxu0 %v64
    %100 = vmatprep.subr.mxu0 0.0
    %101 = vmatpush1.msra.mxu0 %v63
    %102 = vmatprep.subr.mxu0 0.0
    %103 = vmatpush1.msra.mxu0 %v62
    %104 = vmatprep.subr.mxu0 0.0
    %105 = vmatpush1.msra.mxu0 %v61
    %106 = vmatprep.subr.mxu0 0.0
    %107 = vmatpush2.msra.mxu0 0.0
    %108 = vmatprep.subr.mxu0 0.0
    %109 = vmatpush2.msra.mxu0 0.0
    %110 = vmatprep.subr.mxu0 0.0
    %111 = vmatpush2.msra.mxu0 0.0
    %112 = vmatprep.subr.mxu0 0.0
    %113 = vmatpush2.msra.mxu0 0.0
    %114 = vmatprep.subr.mxu0 0.0
    %115 = vmatpush2.msra.mxu0 0.0
    %116 = vmatprep.subr.mxu0 0.0
    %117 = vmatpush2.msra.mxu0 0.0
    %118 = vmatprep.subr.mxu0 0.0
    %119 = vmatpush2.msra.mxu0 0.0
    %120 = vmatprep.subr.mxu0 0.0
    %121 = vmatpush2.msra.mxu0 0.0
    %122 = vmatprep.subr.mxu0 0.0
    %123 = vmatpush2.msra.mxu0 0.0
    %124 = vmatprep.subr.mxu0 0.0
    %125 = vmatpush2.msra.mxu0 0.0
    %126 = vmatprep.subr.mxu0 0.0
    %127 = vmatpush2.msra.mxu0 0.0
    %128 = vmatprep.subr.mxu0 0.0
    %129 = vmatpush2.msra.mxu0 0.0
    %130 = vmatprep.subr.mxu0 0.0
    %131 = vmatpush2.msra.mxu0 0.0
    %132 = vmatprep.subr.mxu0 0.0
    %133 = vmatpush2.msra.mxu0 0.0
    %134 = vmatprep.subr.mxu0 0.0
    %135 = vmatpush2.msra.mxu0 0.0
    %136 = vmatprep.subr.mxu0 0.0
    %137 = vmatpush2.msra.mxu0 0.0
    %138 = vmatprep.mubr.f32.mxu0 0.0
    %139 = vmatmul.mubr.f32.gmra.mxu0 %v72
    %v140 = vpop.f32.mrf.mxu0
    %v141 = vadd.f32 0.0, %v140
    %v142 = vpop.f32.mrf.mxu0
    %143 = vdwg.mxu0
    %v146 = vunpack.c.l.s4 1966171168
    %v147 = vunpack.c.0.s8 %v146
    %v148 = vlaneseq
    %v149 = vshrl.u32 %v148, 7
    %v150 = vsub.s32 %v147, %v149
    %v151 = vrot.slane %v141, %v150
    %v152 = vcombine.high %v151, %v151
    %v154 = vunpack.c.l.s4 1966171168
    %v155 = vunpack.c.0.s8 %v154
    %v156 = vlaneseq
    %v157 = vshrl.u32 %v156, 7
    %v158 = vsub.s32 %v155, %v157
    %v159 = vrot.slane %v151, %v158
    %v161 = vunpack.c.l.s4 1966171168
    %v162 = vunpack.c.0.s8 %v161
    %v163 = vlaneseq
    %v164 = vshrl.u32 %v163, 7
    %v165 = vsub.s32 %v162, %v164
    %v166 = vrot.slane %v152, %v165
    %v167 = vlaneseq
    %v168 = vshrl.u32 %v167, 7
    %v169 = vsub.s32 0, %v168
    %v170 = vrot.slane %v159, %v169
    %v171 = vlaneseq
    %v172 = vshrl.u32 %v171, 7
    %v173 = vsub.s32 0, %v172
    %v174 = vrot.slane %v166, %v173
    %v177 = vmul.f32 %v67, %v170
    %v178 = vmul.f32 %v68, %v174
    %vm179 = vcmask 523264
    %v180 = vsel %vm179, %v177, 0.0
    %181 = vadd.xlane.f32.xlu0 %v180
    %v182 = vpop.xlane.xlu0 %181
    %v183 = vsel %vm179, %v178, 0.0
    %184 = vadd.xlane.f32.xlu0 %v183
    %v185 = vpop.xlane.xlu0 %184
    %vm186 = vcmp.ne.s32.totalorder %v69, 0
    %v189 = vlaneseq
    %v190 = vand.u32 %v189, 127
    %v191 = vlaneseq
    %v192 = vshrl.u32 %v191, 7
    %v193 = vsub.s32 %v190, %v192
    %v194 = vrot.slane %v182, %v193
    %v195 = vlaneseq
    %v196 = vshrl.u32 %v195, 7
    %v197 = vsub.s32 %v190, %v196
    %v198 = vrot.slane %v185, %v197
    %vm199 = vcmask 1041409
    %v200 = vsel %vm199, %v198, %v194
    %v202 = vsel %vm186, -inf, %v200
    %vm203 = vcmask 58368
    %v204 = vsel %vm203, %v202, -inf
    %205 = vmax.xlane.f32.xlu0 %v204
    %v206 = vpop.xlane.xlu0 %205
    %v207 = vsub.f32 %v202, %v206
    %v208 = vmul.f32 %v207, 1.442695
    %v209 = vpow.pop %v208
    %v210 = vsel %vm203, %v209, 0.0
    %211 = vadd.xlane.f32.xlu0 %v210
    %v212 = vpop.xlane.xlu0 %211
    %v213 = vrcp.pop %v212
    %v214 = vmul.f32 %v212, %v213
    %v215 = vsub.f32 2.0, %v214
    %v216 = vmul.f32 %v213, %v215
    %v217 = vmul.f32 %v209, %v216
    %v218 = vlaneseq
    %v219 = vshrl.u32 %v218, 7
    %v220 = vsub.s32 0, %v219
    %v221 = vrot.slane %v217, %v220
    %223 = vbcast.lane.b32.xlu0 %v221, 256
    %v224 = vpop.permute.xlu0 %223
    %v225 = vlaneseq
    %v226 = vshrl.u32 %v225, 7
    %v227 = vsub.s32 1, %v226
    %v228 = vrot.slane %v217, %v227
    %230 = vbcast.lane.b32.xlu0 %v228, 256
    %v231 = vpop.permute.xlu0 %230
    %v232 = vmul.f32 %v224, %v67
    %v233 = vmul.f32 %v231, %v68
    %v234 = vsel %vm179, %v232, 0.0
    %v235 = vrot.slane %v234, 4
    %v236 = vadd.f32 %v234, %v235
    %v237 = vrot.slane %v236, 2
    %v238 = vadd.f32 %v236, %v237
    %v239 = vrot.slane %v238, 1
    %v240 = vadd.f32 %v238, %v239
    %v241 = vsel %vm179, %v233, 0.0
    %v242 = vrot.slane %v241, 4
    %v243 = vadd.f32 %v241, %v242
    %v244 = vrot.slane %v243, 2
    %v245 = vadd.f32 %v243, %v244
    %v246 = vrot.slane %v245, 1
    %v247 = vadd.f32 %v245, %v246
    %v250 = vsel %vm199, %v247, %v240
    %vm252 = vcmask 517120
    %253 = vst.msk [vmem:[#allocation8] sm:$0x3] %vm252, %v250
    %254 = vst.msk [vmem:[#allocation9] sm:$0x3] %vm203, %v217
    // Predicated region
    $region30: #{tpu_custom_call.1} parent=1 // pred_check
      _
    $region31: #{tpu_custom_call.1} parent=1 // pred_check_branch
      %256 = sbr.rel (0) target = $region33
    $region32: #{tpu_custom_call.1} parent=1 // pred_region
      %s258 = ssub.s32 32, 32
      %259 = vsyncadd [#allocation4], %s258
      %s261 = sshll.u32 [#allocation8], 4
      %s262 = int_to_ptr.vmem [resolvable:$true] %s261
      %264 = dma.vmem_to_hbm [thread:$0]  %s262, 32, %s4, [#allocation4]
    $region33: #{tpu_custom_call.1} parent=1 // pred_fallthru
      _
    // Predicated region
    $region34: #{tpu_custom_call.1} parent=1 // pred_check
      _
    $region35: #{tpu_custom_call.1} parent=1 // pred_check_branch
      %266 = sbr.rel (0) target = $region37
    $region36: #{tpu_custom_call.1} parent=1 // pred_region
      %s268 = ssub.s32 32, 32
      %269 = vsyncadd [#allocation10], %s268
      %s271 = sshll.u32 [#allocation9], 4
      %s272 = int_to_ptr.vmem [resolvable:$true] %s271
      %274 = dma.vmem_to_hbm [thread:$0]  %s272, 32, %s5, [#allocation10]
    $region37: #{tpu_custom_call.1} parent=1 // pred_fallthru
      _
    // Predicated region
    $region38: #{tpu_custom_call.1} parent=1 // pred_check
      _
    $region39: #{tpu_custom_call.1} parent=1 // pred_check_branch
      %276 = sbr.rel (0) target = $region41
    $region40: #{tpu_custom_call.1} parent=1 // pred_region
      %277 = dma.done [#allocation4], 32
    $region41: #{tpu_custom_call.1} parent=1 // pred_fallthru
      _
    // Predicated region
    $region42: #{tpu_custom_call.1} parent=1 // pred_check
      _
    $region43: #{tpu_custom_call.1} parent=1 // pred_check_branch
      %279 = sbr.rel (0) target = $region45
    $region44: #{tpu_custom_call.1} parent=1 // pred_region
      %280 = dma.done [#allocation10], 32
    $region45: #{tpu_custom_call.1} parent=1 // pred_fallthru
      _
    %281 = vsyncpa [#allocation3], 1
    %282 = vsyncpa [#allocation6], 1
    %283 = vsyncpa [#allocation4], 1
    %284 = vsyncpa [#allocation10], 1

// kernel: tpu_custom_call.1
$region0: #{tpu_custom_call.1}
  #allocation0 [shape = 'u32[]', space=smem, size = 0x4, offset = 0x4, fixed_abs, tag = 'smem constant byte address 0x4 - core index']
  #allocation1 [shape = 'u32[144,128]{1,0:T(1,128)}', space=vmem, size = 0x12000, scoped, tag = 'internal scratch']
  %s0 = inlined_call_operand.hbm [shape: f32[2,32], index: 0, kind: input, shape index: {}]
  %s1 = inlined_call_operand.hbm [shape: f32[32,64], index: 1, kind: input, shape index: {}]
  %s2 = inlined_call_operand.hbm [shape: bf16[2,8,64], index: 2, kind: input, shape index: {}]
  %s3 = inlined_call_operand.vmem [shape: s32[2,8], index: 3, kind: input, shape index: {}]
  %s4 = inlined_call_operand.hbm [shape: f32[2,64], index: 4, kind: output, shape index: {0}]
  %s5 = inlined_call_operand.hbm [shape: f32[2,8], index: 5, kind: output, shape index: {1}]
  %6 = xla_tuple %s4, %s5
  %s7 = sld [smem:[#allocation0]]
  $region46: #{tpu_custom_call.1} parent=0
    _
  %s9 = ssub.s32 1, %s7
  %s10 = scalar_select 0, %s9, %s7
  $region1: #{tpu_custom_call.1} parent=0
    #allocation2 [shape = 'u8[1024]{0}', space=vmem, size = 0x400, scoped, tag = 'input window, operand 0, single buffered']
    #allocation3 [shape = 's32[1]{0}', space=sflag, size = 0x4, scoped, tag = 'scoped memory for tpu_custom_call.1']
    #allocation4 [shape = 's32[1]{0}', space=sflag, size = 0x4, scoped, tag = 'scoped memory for tpu_custom_call.1']
    #allocation5 [shape = 'u8[16384]{0}', space=vmem, size = 0x4000, scoped, tag = 'input window, operand 1, single buffered']
    #allocation6 [shape = 's32[1]{0}', space=sflag, size = 0x4, scoped, tag = 'scoped memory for tpu_custom_call.1']
    #allocation7 [shape = 'u8[4096]{0}', space=vmem, size = 0x1000, scoped, tag = 'input window, operand 2, single buffered']
    #allocation8 [shape = 'u8[1024]{0}', space=vmem, size = 0x400, scoped, tag = 'output window, operand 0, single buffered']
    #allocation9 [shape = 'u8[1024]{0}', space=vmem, size = 0x400, scoped, tag = 'output window, operand 1, single buffered']
    #allocation10 [shape = 's32[1]{0}', space=sflag, size = 0x4, scoped, tag = 'scoped memory for tpu_custom_call.1']
    %11 = vsyncpa [#allocation3], 0
    %12 = vsyncpa [#allocation6], 0
    %13 = vsyncpa [#allocation4], 0
    %14 = vsyncpa [#allocation10], 0
    // Predicated region
    $region2: #{tpu_custom_call.1} parent=1 // pred_check
      _
    $region3: #{tpu_custom_call.1} parent=1 // pred_check_branch
      %16 = sbr.rel (0) target = $region5
    $region4: #{tpu_custom_call.1} parent=1 // pred_region
      %s18 = ssub.s32 32, 32
      %19 = vsyncadd [#allocation3], %s18
      %s21 = sshll.u32 [#allocation2], 4
      %s22 = int_to_ptr.vmem [resolvable:$true] %s21
      %24 = dma.hbm_to_vmem [thread:$0]  %s0, 32, %s22, [#allocation3]
    $region5: #{tpu_custom_call.1} parent=1 // pred_fallthru
      _
    // Predicated region
    $region6: #{tpu_custom_call.1} parent=1 // pred_check
      _
    $region7: #{tpu_custom_call.1} parent=1 // pred_check_branch
      %26 = sbr.rel (0) target = $region9
    $region8: #{tpu_custom_call.1} parent=1 // pred_region
      %s28 = ssub.s32 512, 512
      %29 = vsyncadd [#allocation6], %s28
      %s30 = sshll.u32 [#allocation5], 4
      %s31 = int_to_ptr.vmem [resolvable:$true] %s30
      %36 = dma.hbm_to_vmem [thread:$0]  %s1, 512, %s31, [#allocation6], 128, 128, 8
    $region9: #{tpu_custom_call.1} parent=1 // pred_fallthru
      _
    // Predicated region
    $region10: #{tpu_custom_call.1} parent=1 // pred_check
      _
    $region11: #{tpu_custom_call.1} parent=1 // pred_check_branch
      %38 = sbr.rel (0) target = $region13
    $region12: #{tpu_custom_call.1} parent=1 // pred_region
      %s40 = ssub.s32 128, 128
      %41 = vsyncadd [#allocation6], %s40
      %s42 = sshll.u32 [#allocation7], 4
      %s43 = int_to_ptr.vmem [resolvable:$true] %s42
      %48 = dma.hbm_to_vmem [thread:$0]  %s2, 128, %s43, [#allocation6], 64, 64, 4
    $region13: #{tpu_custom_call.1} parent=1 // pred_fallthru
      _
    // Predicated region
    $region14: #{tpu_custom_call.1} parent=1 // pred_check
      _
    $region15: #{tpu_custom_call.1} parent=1 // pred_check_branch
      %50 = sbr.rel (0) target = $region17
    $region16: #{tpu_custom_call.1} parent=1 // pred_region
      _
    $region17: #{tpu_custom_call.1} parent=1 // pred_fallthru
      _
    // Predicated region
    $region18: #{tpu_custom_call.1} parent=1 // pred_check
      _
    $region19: #{tpu_custom_call.1} parent=1 // pred_check_branch
      %52 = sbr.rel (0) target = $region21
    $region20: #{tpu_custom_call.1} parent=1 // pred_region
      %53 = dma.done [#allocation3], 32
    $region21: #{tpu_custom_call.1} parent=1 // pred_fallthru
      _
    // Predicated region
    $region22: #{tpu_custom_call.1} parent=1 // pred_check
      _
    $region23: #{tpu_custom_call.1} parent=1 // pred_check_branch
      %55 = sbr.rel (0) target = $region25
    $region24: #{tpu_custom_call.1} parent=1 // pred_region
      %56 = dma.done [#allocation6], 512
    $region25: #{tpu_custom_call.1} parent=1 // pred_fallthru
      _
    // Predicated region
    $region26: #{tpu_custom_call.1} parent=1 // pred_check
      _
    $region27: #{tpu_custom_call.1} parent=1 // pred_check_branch
      %58 = sbr.rel (0) target = $region29
    $region28: #{tpu_custom_call.1} parent=1 // pred_region
      %59 = dma.done [#allocation6], 128
    $region29: #{tpu_custom_call.1} parent=1 // pred_fallthru
      _
    %v60 = vld [vmem:[#allocation2] sm:$0x3]
    %v61 = vld [vmem:[#allocation5] sm:$0xff]
    %v62 = vld [vmem:[#allocation5 + $0x8] sm:$0xff]
    %v63 = vld [vmem:[#allocation5 + $0x10] sm:$0xff]
    %v64 = vld [vmem:[#allocation5 + $0x18] sm:$0xff]
    %v65 = vld [vmem:[#allocation7] sm:$0xf]
    %v66 = vld [vmem:[#allocation7 + $0x4] sm:$0xf]
    %v67 = vunpack.c.l.bf16 %v65
    %v68 = vunpack.c.l.bf16 %v66
    %v69 = vld [vmem:[%s3] sm:$0x3]
    %vm70 = vcmask 261120
    %v72 = vsel %vm70, %v60, 0
    %74 = vmatprep.subr.mxu0 0.0
    %75 = vmatpush1.msra.mxu0 0.0
    %76 = vmatprep.subr.mxu0 0.0
    %77 = vmatpush1.msra.mxu0 0.0
    %78 = vmatprep.subr.mxu0 0.0
    %79 = vmatpush1.msra.mxu0 0.0
    %80 = vmatprep.subr.mxu0 0.0
    %81 = vmatpush1.msra.mxu0 0.0
    %82 = vmatprep.subr.mxu0 0.0
    %83 = vmatpush1.msra.mxu0 0.0
    %84 = vmatprep.subr.mxu0 0.0
    %85 = vmatpush1.msra.mxu0 0.0
    %86 = vmatprep.subr.mxu0 0.0
    %87 = vmatpush1.msra.mxu0 0.0
    %88 = vmatprep.subr.mxu0 0.0
    %89 = vmatpush1.msra.mxu0 0.0
    %90 = vmatprep.subr.mxu0 0.0
    %91 = vmatpush1.msra.mxu0 0.0
    %92 = vmatprep.subr.mxu0 0.0
    %93 = vmatpush1.msra.mxu0 0.0
    %94 = vmatprep.subr.mxu0 0.0
    %95 = vmatpush1.msra.mxu0 0.0
    %96 = vmatprep.subr.mxu0 0.0
    %97 = vmatpush1.msra.mxu0 0.0
    %98 = vmatprep.subr.mxu0 0.0
    %99 = vmatpush1.msra.mxu0 %v64
    %100 = vmatprep.subr.mxu0 0.0
    %101 = vmatpush1.msra.mxu0 %v63
    %102 = vmatprep.subr.mxu0 0.0
    %103 = vmatpush1.msra.mxu0 %v62
    %104 = vmatprep.subr.mxu0 0.0
    %105 = vmatpush1.msra.mxu0 %v61
    %106 = vmatprep.subr.mxu0 0.0
    %107 = vmatpush2.msra.mxu0 0.0
    %108 = vmatprep.subr.mxu0 0.0
    %109 = vmatpush2.msra.mxu0 0.0
    %110 = vmatprep.subr.mxu0 0.0
    %111 = vmatpush2.msra.mxu0 0.0
    %112 = vmatprep.subr.mxu0 0.0
    %113 = vmatpush2.msra.mxu0 0.0
    %114 = vmatprep.subr.mxu0 0.0
    %115 = vmatpush2.msra.mxu0 0.0
    %116 = vmatprep.subr.mxu0 0.0
    %117 = vmatpush2.msra.mxu0 0.0
    %118 = vmatprep.subr.mxu0 0.0
    %119 = vmatpush2.msra.mxu0 0.0
    %120 = vmatprep.subr.mxu0 0.0
    %121 = vmatpush2.msra.mxu0 0.0
    %122 = vmatprep.subr.mxu0 0.0
    %123 = vmatpush2.msra.mxu0 0.0
    %124 = vmatprep.subr.mxu0 0.0
    %125 = vmatpush2.msra.mxu0 0.0
    %126 = vmatprep.subr.mxu0 0.0
    %127 = vmatpush2.msra.mxu0 0.0
    %128 = vmatprep.subr.mxu0 0.0
    %129 = vmatpush2.msra.mxu0 0.0
    %130 = vmatprep.subr.mxu0 0.0
    %131 = vmatpush2.msra.mxu0 0.0
    %132 = vmatprep.subr.mxu0 0.0
    %133 = vmatpush2.msra.mxu0 0.0
    %134 = vmatprep.subr.mxu0 0.0
    %135 = vmatpush2.msra.mxu0 0.0
    %136 = vmatprep.subr.mxu0 0.0
    %137 = vmatpush2.msra.mxu0 0.0
    %138 = vmatprep.mubr.f32.mxu0 0.0
    %139 = vmatmul.mubr.f32.gmra.mxu0 %v72
    %v140 = vpop.f32.mrf.mxu0
    %v141 = vadd.f32 0.0, %v140
    %v142 = vpop.f32.mrf.mxu0
    %143 = vdwg.mxu0
    %v146 = vunpack.c.l.s4 1966171168
    %v147 = vunpack.c.0.s8 %v146
    %v148 = vlaneseq
    %v149 = vshrl.u32 %v148, 7
    %v150 = vsub.s32 %v147, %v149
    %v151 = vrot.slane %v141, %v150
    %v152 = vcombine.high %v151, %v151
    %v154 = vunpack.c.l.s4 1966171168
    %v155 = vunpack.c.0.s8 %v154
    %v156 = vlaneseq
    %v157 = vshrl.u32 %v156, 7
    %v158 = vsub.s32 %v155, %v157
    %v159 = vrot.slane %v151, %v158
    %v161 = vunpack.c.l.s4 1966171168
    %v162 = vunpack.c.0.s8 %v161
    %v163 = vlaneseq
    %v164 = vshrl.u32 %v163, 7
    %v165 = vsub.s32 %v162, %v164
    %v166 = vrot.slane %v152, %v165
    %v167 = vlaneseq
    %v168 = vshrl.u32 %v167, 7
    %v169 = vsub.s32 0, %v168
    %v170 = vrot.slane %v159, %v169
    %v171 = vlaneseq
    %v172 = vshrl.u32 %v171, 7
    %v173 = vsub.s32 0, %v172
    %v174 = vrot.slane %v166, %v173
    %v177 = vmul.f32 %v67, %v170
    %v178 = vmul.f32 %v68, %v174
    %vm179 = vcmask 523264
    %v180 = vsel %vm179, %v177, 0.0
    %181 = vadd.xlane.f32.xlu0 %v180
    %v182 = vpop.xlane.xlu0 %181
    %v183 = vsel %vm179, %v178, 0.0
    %184 = vadd.xlane.f32.xlu0 %v183
    %v185 = vpop.xlane.xlu0 %184
    %vm186 = vcmp.ne.s32.totalorder %v69, 0
    %v189 = vlaneseq
    %v190 = vand.u32 %v189, 127
    %v191 = vlaneseq
    %v192 = vshrl.u32 %v191, 7
    %v193 = vsub.s32 %v190, %v192
    %v194 = vrot.slane %v182, %v193
    %v195 = vlaneseq
    %v196 = vshrl.u32 %v195, 7
    %v197 = vsub.s32 %v190, %v196
    %v198 = vrot.slane %v185, %v197
    %vm199 = vcmask 1041409
    %v200 = vsel %vm199, %v198, %v194
    %v202 = vsel %vm186, -inf, %v200
    %vm203 = vcmask 58368
    %v204 = vsel %vm203, %v202, -inf
    %205 = vmax.xlane.f32.xlu0 %v204
    %v206 = vpop.xlane.xlu0 %205
    %v207 = vsub.f32 %v202, %v206
    %v208 = vmul.f32 %v207, 1.442695
    %v209 = vpow.pop %v208
    %v210 = vsel %vm203, %v209, 0.0
    %211 = vadd.xlane.f32.xlu0 %v210
    %v212 = vpop.xlane.xlu0 %211
    %v213 = vrcp.pop %v212
    %v214 = vmul.f32 %v212, %v213
    %v215 = vsub.f32 2.0, %v214
    %v216 = vmul.f32 %v213, %v215
    %v217 = vmul.f32 %v209, %v216
    %v218 = vlaneseq
    %v219 = vshrl.u32 %v218, 7
    %v220 = vsub.s32 0, %v219
    %v221 = vrot.slane %v217, %v220
    %223 = vbcast.lane.b32.xlu0 %v221, 256
    %v224 = vpop.permute.xlu0 %223
    %v225 = vlaneseq
    %v226 = vshrl.u32 %v225, 7
    %v227 = vsub.s32 1, %v226
    %v228 = vrot.slane %v217, %v227
    %230 = vbcast.lane.b32.xlu0 %v228, 256
    %v231 = vpop.permute.xlu0 %230
    %v232 = vmul.f32 %v224, %v67
    %v233 = vmul.f32 %v231, %v68
    %v234 = vsel %vm179, %v232, 0.0
    %v235 = vrot.slane %v234, 4
    %v236 = vadd.f32 %v234, %v235
    %v237 = vrot.slane %v236, 2
    %v238 = vadd.f32 %v236, %v237
    %v239 = vrot.slane %v238, 1
    %v240 = vadd.f32 %v238, %v239
    %v241 = vsel %vm179, %v233, 0.0
    %v242 = vrot.slane %v241, 4
    %v243 = vadd.f32 %v241, %v242
    %v244 = vrot.slane %v243, 2
    %v245 = vadd.f32 %v243, %v244
    %v246 = vrot.slane %v245, 1
    %v247 = vadd.f32 %v245, %v246
    %v250 = vsel %vm199, %v247, %v240
    %vm252 = vcmask 517120
    %253 = vst.msk [vmem:[#allocation8] sm:$0x3] %vm252, %v250
    %254 = vst.msk [vmem:[#allocation9] sm:$0x3] %vm203, %v217
    // Predicated region
    $region30: #{tpu_custom_call.1} parent=1 // pred_check
      _
    $region31: #{tpu_custom_call.1} parent=1 // pred_check_branch
      %256 = sbr.rel (0) target = $region33
    $region32: #{tpu_custom_call.1} parent=1 // pred_region
      %s258 = ssub.s32 32, 32
      %259 = vsyncadd [#allocation4], %s258
      %s261 = sshll.u32 [#allocation8], 4
      %s262 = int_to_ptr.vmem [resolvable:$true] %s261
      %264 = dma.vmem_to_hbm [thread:$0]  %s262, 32, %s4, [#allocation4]
    $region33: #{tpu_custom_call.1} parent=1 // pred_fallthru
      _
    // Predicated region
    $region34: #{tpu_custom_call.1} parent=1 // pred_check
      _
    $region35: #{tpu_custom_call.1} parent=1 // pred_check_branch
      %266 = sbr.rel (0) target = $region37
    $region36: #{tpu_custom_call.1} parent=1 // pred_region
      %s268 = ssub.s32 32, 32
      %269 = vsyncadd [#allocation10], %s268
      %s271 = sshll.u32 [#allocation9], 4
      %s272 = int_to_ptr.vmem [resolvable:$true] %s271
      %274 = dma.vmem_to_hbm [thread:$0]  %s272, 32, %s5, [#allocation10]
    $region37: #{tpu_custom_call.1} parent=1 // pred_fallthru
      _
    // Predicated region
    $region38: #{tpu_custom_call.1} parent=1 // pred_check
      _
    $region39: #{tpu_custom_call.1} parent=1 // pred_check_branch
      %276 = sbr.rel (0) target = $region41
    $region40: #{tpu_custom_call.1} parent=1 // pred_region
      %277 = dma.done [#allocation4], 32
    $region41: #{tpu_custom_call.1} parent=1 // pred_fallthru
      _
    // Predicated region
    $region42: #{tpu_custom_call.1} parent=1 // pred_check
      _
    $region43: #{tpu_custom_call.1} parent=1 // pred_check_branch
      %279 = sbr.rel (0) target = $region45
    $region44: #{tpu_custom_call.1} parent=1 // pred_region
      %280 = dma.done [#allocation10], 32
    $region45: #{tpu_custom_call.1} parent=1 // pred_fallthru
      _
    %281 = vsyncpa [#allocation3], 1
    %282 = vsyncpa [#allocation6], 1
    %283 = vsyncpa [#allocation4], 1
    %284 = vsyncpa [#allocation10], 1

</llo_original>
